<compile_context>
chip_gen: v7x
topology: tpu7x:2x2x1
jax: 0.10.0
libtpu: 0.0.40
codegen_flags: <defaults>
</compile_context>

<pallas_src>
import jax
import jax.numpy as jnp
from jax import lax
from jax.experimental import pallas as pl
from jax.experimental.pallas import tpu as pltpu


# ---------------------------------------------------------------------------
# Stage 1: fused q/k/v projections (1x1 convs == per-pixel channel matmuls)
# ---------------------------------------------------------------------------
def _make_proj_kernel(cq):
    def _proj_kernel(x1_ref, x2_ref, wqv_ref, bqv_ref, wk_ref, bk_ref,
                     qk_ref, v_ref):
        # x1/x2: (1, tn, C) f32; wqv: (C, Cq+C) bf16 = [Wq^T | Wv^T]; wk: (C, Cq).
        x1 = x1_ref[0].astype(jnp.bfloat16)                      # (tn, C)
        x2 = x2_ref[0].astype(jnp.bfloat16)                      # (tn, C)

        # One wide MXU pass covers q and v for this x1 tile.
        qv = jnp.dot(x1, wqv_ref[...],
                     preferred_element_type=jnp.float32) + bqv_ref[...]  # (tn, Cq+C)
        k = jnp.dot(x2, wk_ref[...],
                    preferred_element_type=jnp.float32) + bk_ref[...]    # (tn, Cq)

        q = qv[:, :cq]                                           # (tn, Cq)
        v = qv[:, cq:]                                           # (tn, C)

        # Lane-dense packed slab: q in lanes [0:Cq], k in lanes [Cq:2Cq].
        qk_ref[0] = jnp.concatenate([q, k], axis=-1).astype(qk_ref.dtype)
        v_ref[0] = v.astype(v_ref.dtype)

    return _proj_kernel


# ---------------------------------------------------------------------------
# Stage 2: flash-style position attention + residual (online softmax)
# ---------------------------------------------------------------------------
def _make_attn_kernel(cq, bf16_softmax):
    # bf16 exp uses the v6e/v7x EUP bf16 path and drops the per-step f32->bf16
    # cast of the probability tile.  Set bf16_softmax=False on v5e (no bf16
    # EUP/VPU path there).
    p_dtype = jnp.bfloat16 if bf16_softmax else jnp.float32

    def _attn_kernel(qk_q_ref, qk_k_ref, v_ref, x1_ref, gamma_ref, o_ref,
                     m_sc, l_sc, acc_sc):
        ki = pl.program_id(2)

        @pl.when(ki == 0)
        def _():
            m_sc[...] = jnp.full_like(m_sc, -jnp.inf)
            l_sc[...] = jnp.zeros_like(l_sc)
            acc_sc[...] = jnp.zeros_like(acc_sc)

        q = qk_q_ref[0, :, pl.ds(0, cq)]                         # (tq, Cq) bf16
        k = qk_k_ref[0, :, pl.ds(cq, cq)]                        # (tk, Cq) bf16

        # energy[i, j] = <q_i, k_j>; contract last dims directly (no k.T copy).
        s = lax.dot_general(q, k,
                            dimension_numbers=(((1,), (1,)), ((), ())),
                            preferred_element_type=jnp.float32)  # (tq, tk) f32

        m_prev = m_sc[...]
        m_new = jnp.maximum(m_prev, jnp.max(s, axis=-1, keepdims=True))
        alpha = jnp.exp(m_prev - m_new)
        p = jnp.exp((s - m_new).astype(p_dtype))                 # (tq, tk)

        # Stats / accumulator stay in f32.
        l_sc[...] = alpha * l_sc[...] + jnp.sum(
            p, axis=-1, keepdims=True, dtype=jnp.float32)
        acc_sc[...] = alpha * acc_sc[...] + jnp.dot(
            p.astype(v_ref.dtype), v_ref[0],
            preferred_element_type=jnp.float32)
        m_sc[...] = m_new

        @pl.when(ki == pl.num_programs(2) - 1)
        def _():
            inv_l = pl.reciprocal(l_sc[...], approx=True)        # EUP slot
            out = acc_sc[...] * inv_l                            # (tq, C) f32
            o_ref[0] = (gamma_ref[0] * out + x1_ref[0]).astype(o_ref.dtype)

    return _attn_kernel


def _pick_tile(n, pref, preferred_multiple):
    """Largest divisor of n that is <= pref, preferring multiples of
    `preferred_multiple`, then multiples of 8 (sublane granularity), then any
    divisor.  Never returns more than pref when n > pref, so the VMEM budget
    stays bounded (no full-N fallback)."""
    if n <= pref:
        return n
    for mult in (preferred_multiple, 8, 1):
        start = pref - (pref % mult)
        for t in range(start, 0, -mult):
            if t > 0 and n % t == 0:
                return t
    return 1  # unreachable


def pam_forward(x1, x2, params, *, n_tile=512, q_tile=1024, k_tile=1024,
                bf16_softmax=True):
    B, C, H, W = x1.shape
    N = H * W
    Cq = params["wq"].shape[0]

    # NCHW -> (B, N, C)
    x1f = jnp.transpose(x1, (0, 2, 3, 1)).reshape(B, N, C).astype(jnp.float32)
    x2f = jnp.transpose(x2, (0, 2, 3, 1)).reshape(B, N, C).astype(jnp.float32)

    # Grid-invariant prep done once in the wrapper: fuse Wq^T|Wv^T, transpose
    # to (C_in, C_out) layout, and cast MXU operands to bf16.
    wqv = jnp.concatenate(
        [params["wq"].T, params["wv"].T], axis=1).astype(jnp.bfloat16)  # (C, Cq+C)
    bqv = jnp.concatenate(
        [params["bq"].reshape(-1), params["bv"].reshape(-1)]
    ).reshape(1, Cq + C).astype(jnp.float32)
    wk_t = params["wk"].T.astype(jnp.bfloat16)                          # (C, Cq)
    bk = params["bk"].reshape(1, Cq).astype(jnp.float32)
    gamma = jnp.asarray(params["gamma"], jnp.float32).reshape(-1)[:1]   # (1,)

    # Tile selection. tk prefers multiples of 128 (lane axis of the logits
    # tile and the p@v contraction); tq/tn prefer multiples of 16 (bf16
    # sublane packing).  Cap tq at N/2 when B == 1 so the "parallel" grid
    # extent is >= 2 and both v7x TensorCores stay busy.
    tn = _pick_tile(N, n_tile, 16)
    tk = _pick_tile(N, k_tile, 128)
    q_pref = q_tile if B > 1 else min(q_tile, max(N // 2, 16))
    tq = _pick_tile(N, q_pref, 16)

    # Keep stage-2 resident VMEM inside a v7x-safe budget (64 MiB physical).
    def _stage2_vmem_bytes(tq_, tk_):
        in_bufs = 2 * (tq_ * 2 * Cq * 2      # qk (query block), bf16, 2 buffers
                       + tk_ * 2 * Cq * 2    # qk (key block)
                       + tk_ * C * 2         # v
                       + tq_ * C * 4)        # x1 residual, f32
        out_bufs = 2 * tq_ * C * 4           # f32 output
        scratch = tq_ * C * 4 + 2 * tq_ * 4  # acc + m + l
        return in_bufs + out_bufs + scratch

    budget = 40 * 1024 * 1024
    while _stage2_vmem_bytes(tq, tk) > budget and (tq > 128 or tk > 128):
        if tq >= tk and tq > 128:
            tq = _pick_tile(N, max(tq // 2, 128), 16)
        elif tk > 128:
            tk = _pick_tile(N, max(tk // 2, 128), 128)
        else:
            break

    vmem_limit = int(min(56 * 1024 * 1024,
                         max(32 * 1024 * 1024, 2 * _stage2_vmem_bytes(tq, tk))))

    # ---- Stage 1: projections, done exactly once per position ----
    qk, v = pl.pallas_call(
        _make_proj_kernel(Cq),
        out_shape=(
            jax.ShapeDtypeStruct((B, N, 2 * Cq), jnp.bfloat16),   # packed q|k
            jax.ShapeDtypeStruct((B, N, C), jnp.bfloat16),        # v
        ),
        grid_spec=pltpu.PrefetchScalarGridSpec(
            num_scalar_prefetch=0,
            grid=(B, N // tn),
            in_specs=[
                pl.BlockSpec((1, tn, C), lambda b, i: (b, i, 0)),       # x1
                pl.BlockSpec((1, tn, C), lambda b, i: (b, i, 0)),       # x2
                pl.BlockSpec((C, Cq + C), lambda b, i: (0, 0)),         # [Wq|Wv]^T
                pl.BlockSpec((1, Cq + C), lambda b, i: (0, 0)),         # [bq|bv]
                pl.BlockSpec((C, Cq), lambda b, i: (0, 0)),             # Wk^T
                pl.BlockSpec((1, Cq), lambda b, i: (0, 0)),             # bk
            ],
            out_specs=(
                pl.BlockSpec((1, tn, 2 * Cq), lambda b, i: (b, i, 0)),
                pl.BlockSpec((1, tn, C), lambda b, i: (b, i, 0)),
            ),
        ),
        compiler_params=pltpu.CompilerParams(
            dimension_semantics=("parallel", "parallel")),
    )(x1f, x2f, wqv, bqv, wk_t, bk)

    # ---- Stage 2: tiled flash attention + residual ----
    out_flat = pl.pallas_call(
        _make_attn_kernel(Cq, bf16_softmax),
        out_shape=jax.ShapeDtypeStruct((B, N, C), jnp.float32),
        grid_spec=pltpu.PrefetchScalarGridSpec(
            num_scalar_prefetch=0,
            grid=(B, N // tq, N // tk),
            in_specs=[
                pl.BlockSpec((1, tq, 2 * Cq), lambda b, qi, ki: (b, qi, 0)),  # qk (q rows)
                pl.BlockSpec((1, tk, 2 * Cq), lambda b, qi, ki: (b, ki, 0)),  # qk (k rows)
                pl.BlockSpec((1, tk, C), lambda b, qi, ki: (b, ki, 0)),       # v
                pl.BlockSpec((1, tq, C), lambda b, qi, ki: (b, qi, 0)),       # x1 residual
                pl.BlockSpec(memory_space=pltpu.MemorySpace.SMEM),            # gamma
            ],
            out_specs=pl.BlockSpec((1, tq, C), lambda b, qi, ki: (b, qi, 0)),
            scratch_shapes=[
                pltpu.VMEM((tq, 1), jnp.float32),    # running row max
                pltpu.VMEM((tq, 1), jnp.float32),    # running row sum
                pltpu.VMEM((tq, C), jnp.float32),    # output accumulator
            ],
        ),
        compiler_params=pltpu.CompilerParams(
            dimension_semantics=("parallel", "parallel", "arbitrary"),
            vmem_limit_bytes=vmem_limit),
    )(qk, qk, v, x1f, gamma)

    # (B, N, C) -> NCHW
    return out_flat.reshape(B, H, W, C).transpose(0, 3, 1, 2)


def pam_reference(x1, x2, params):
    """Pure-JAX f32 reference mirroring the PyTorch forward (NCHW)."""
    B, C, H, W = x1.shape
    N = H * W

    def conv1x1(x, w, b):
        return jnp.einsum("bchw,oc->bohw", x, w) + b[None, :, None, None]

    q = conv1x1(x1, params["wq"], params["bq"][0]).reshape(B, -1, N).transpose(0, 2, 1)
    k = conv1x1(x2, params["wk"], params["bk"][0]).reshape(B, -1, N)
    energy = jnp.einsum("bnc,bcm->bnm", q, k)
    att = jax.nn.softmax(energy, axis=-1)
    v = conv1x1(x1, params["wv"], params["bv"][0]).reshape(B, -1, N)
    out = jnp.einsum("bcn,bmn->bcm", v, att).reshape(B, C, H, W)
    return params["gamma"][0] * out + x1


if __name__ == "__main__":
    B, C, H, W = 2, 16, 16, 16        # in_dim = 16 -> query/key channels = 16 // 8 = 2
    Cq = C // 8
    N = H * W                         # 256

    key = jax.random.PRNGKey(0)
    kx1, kx2, kq, kk, kv, kbq, kbk, kbv = jax.random.split(key, 8)

    x1 = jax.random.normal(kx1, (B, C, H, W), dtype=jnp.float32)
    x2 = jax.random.normal(kx2, (B, C, H, W), dtype=jnp.float32)

    # 1x1 conv weights stored as (out_ch, in_ch); gamma is the learnable scalar
    # (zero at torch init) — use a nonzero value so the attention path matters.
    params = {
        "wq": 0.1 * jax.random.normal(kq, (Cq, C), dtype=jnp.float32),
        "bq": 0.1 * jax.random.normal(kbq, (1, Cq), dtype=jnp.float32),
        "wk": 0.1 * jax.random.normal(kk, (Cq, C), dtype=jnp.float32),
        "bk": 0.1 * jax.random.normal(kbk, (1, Cq), dtype=jnp.float32),
        "wv": 0.1 * jax.random.normal(kv, (C, C), dtype=jnp.float32),
        "bv": 0.1 * jax.random.normal(kbv, (1, C), dtype=jnp.float32),
        "gamma": jnp.full((1,), 0.5, dtype=jnp.float32),
    }

    # 128-sized tiles so the test exercises the multi-tile online-softmax path
    # (N = 256 -> attention grid (2, 2, 2)). Production defaults are 512/1024.
    out = pam_forward(x1, x2, params, n_tile=128, q_tile=128, k_tile=128)
    out = jax.block_until_ready(out)

    ref = pam_reference(x1, x2, params)
    assert out.shape == (B, C, H, W)
    # bf16 matmul operands + bf16 exp (f32 accumulation/stats) -> relaxed
    # tolerance vs the f32 reference.
    err = float(jnp.max(jnp.abs(out - ref)))
    assert jnp.allclose(out, ref, atol=2e-2, rtol=2e-2), f"max abs err = {err}"

    print("KERNEL_OK")
</pallas_src>

<mosaic_0001>
module attributes {stable_mosaic.version = 11 : i64} {
  func.func @_proj_kernel(%arg0: i32, %arg1: i32, %arg2: memref<1x128x16xf32, #tpu.memory_space<vmem>>, %arg3: memref<1x128x16xf32, #tpu.memory_space<vmem>>, %arg4: memref<16x18xbf16, #tpu.memory_space<vmem>>, %arg5: memref<1x18xf32, #tpu.memory_space<vmem>>, %arg6: memref<16x2xbf16, #tpu.memory_space<vmem>>, %arg7: memref<1x2xf32, #tpu.memory_space<vmem>>, %arg8: memref<1x128x4xbf16, #tpu.memory_space<vmem>>, %arg9: memref<1x128x16xbf16, #tpu.memory_space<vmem>>) attributes {dimension_semantics = [#tpu.dimension_semantics<parallel>, #tpu.dimension_semantics<parallel>], iteration_bounds = array<i64: 2, 2>, scalar_prefetch = 0 : i64, scratch_operands = 0 : i64, tpu.core_type = #tpu.core_type<tc>, window_params = [{transform_indices = @transform_0, window_bounds = array<i64: 1, 128, 16>}, {transform_indices = @transform_1, window_bounds = array<i64: 1, 128, 16>}, {pipeline_mode = #tpu.pipeline_mode<synchronous>, transform_indices = @transform_2, window_bounds = array<i64: 16, 18>}, {pipeline_mode = #tpu.pipeline_mode<synchronous>, transform_indices = @transform_3, window_bounds = array<i64: 1, 18>}, {pipeline_mode = #tpu.pipeline_mode<synchronous>, transform_indices = @transform_4, window_bounds = array<i64: 16, 2>}, {pipeline_mode = #tpu.pipeline_mode<synchronous>, transform_indices = @transform_5, window_bounds = array<i64: 1, 2>}, {transform_indices = @transform_6, window_bounds = array<i64: 1, 128, 4>}, {transform_indices = @transform_7, window_bounds = array<i64: 1, 128, 16>}]} {
    %c0 = arith.constant 0 : index
    %c0_0 = arith.constant 0 : index
    %c0_1 = arith.constant 0 : index
    %0 = vector.load %arg2[%c0, %c0_0, %c0_1] : memref<1x128x16xf32, #tpu.memory_space<vmem>>, vector<1x128x16xf32>
    %1 = vector.shape_cast %0 : vector<1x128x16xf32> to vector<128x16xf32>
    %2 = arith.truncf %1 : vector<128x16xf32> to vector<128x16xbf16>
    %c0_2 = arith.constant 0 : index
    %c0_3 = arith.constant 0 : index
    %c0_4 = arith.constant 0 : index
    %3 = vector.load %arg3[%c0_2, %c0_3, %c0_4] : memref<1x128x16xf32, #tpu.memory_space<vmem>>, vector<1x128x16xf32>
    %4 = vector.shape_cast %3 : vector<1x128x16xf32> to vector<128x16xf32>
    %5 = arith.truncf %4 : vector<128x16xf32> to vector<128x16xbf16>
    %c0_5 = arith.constant 0 : index
    %c0_6 = arith.constant 0 : index
    %6 = vector.load %arg4[%c0_5, %c0_6] : memref<16x18xbf16, #tpu.memory_space<vmem>>, vector<16x18xbf16>
    %cst = arith.constant dense<0.000000e+00> : vector<128x18xf32>
    %7 = tpu.matmul %2, %6, %cst {dimension_numbers = #tpu.dot_dimension_numbers<[1], [0], [0], [1], [0, 0, 1, 1], [], []>} : vector<128x16xbf16>, vector<16x18xbf16>, vector<128x18xf32> -> vector<128x18xf32>
    %c0_7 = arith.constant 0 : index
    %c0_8 = arith.constant 0 : index
    %8 = vector.load %arg5[%c0_7, %c0_8] : memref<1x18xf32, #tpu.memory_space<vmem>>, vector<1x18xf32>
    %9 = vector.broadcast %8 : vector<1x18xf32> to vector<128x18xf32>
    %10 = arith.addf %7, %9 : vector<128x18xf32>
    %c0_9 = arith.constant 0 : index
    %c0_10 = arith.constant 0 : index
    %11 = vector.load %arg6[%c0_9, %c0_10] : memref<16x2xbf16, #tpu.memory_space<vmem>>, vector<16x2xbf16>
    %cst_11 = arith.constant dense<0.000000e+00> : vector<128x2xf32>
    %12 = tpu.matmul %5, %11, %cst_11 {dimension_numbers = #tpu.dot_dimension_numbers<[1], [0], [0], [1], [0, 0, 1, 1], [], []>} : vector<128x16xbf16>, vector<16x2xbf16>, vector<128x2xf32> -> vector<128x2xf32>
    %c0_12 = arith.constant 0 : index
    %c0_13 = arith.constant 0 : index
    %13 = vector.load %arg7[%c0_12, %c0_13] : memref<1x2xf32, #tpu.memory_space<vmem>>, vector<1x2xf32>
    %14 = vector.broadcast %13 : vector<1x2xf32> to vector<128x2xf32>
    %15 = arith.addf %12, %14 : vector<128x2xf32>
    %16 = vector.extract_strided_slice %10 {offsets = [0, 0], sizes = [128, 2], strides = [1, 1]} : vector<128x18xf32> to vector<128x2xf32>
    %17 = vector.extract_strided_slice %10 {offsets = [0, 2], sizes = [128, 16], strides = [1, 1]} : vector<128x18xf32> to vector<128x16xf32>
    %18 = tpu.concatenate %16, %15 in 1 : vector<128x2xf32>, vector<128x2xf32> -> vector<128x4xf32>
    %19 = arith.truncf %18 : vector<128x4xf32> to vector<128x4xbf16>
    %c0_14 = arith.constant 0 : index
    %c0_15 = arith.constant 0 : index
    %c0_16 = arith.constant 0 : index
    %20 = vector.load %arg8[%c0_14, %c0_15, %c0_16] : memref<1x128x4xbf16, #tpu.memory_space<vmem>>, vector<1x128x4xbf16>
    %21 = vector.shape_cast %20 : vector<1x128x4xbf16> to vector<128x4xbf16>
    %22 = vector.shape_cast %19 : vector<128x4xbf16> to vector<1x128x4xbf16>
    tpu.vector_store %arg8[%c0_14, %c0_15, %c0_16], %22 {strides = array<i32>} : memref<1x128x4xbf16, #tpu.memory_space<vmem>>, vector<1x128x4xbf16>,
    %23 = arith.truncf %17 : vector<128x16xf32> to vector<128x16xbf16>
    %c0_17 = arith.constant 0 : index
    %c0_18 = arith.constant 0 : index
    %c0_19 = arith.constant 0 : index
    %24 = vector.load %arg9[%c0_17, %c0_18, %c0_19] : memref<1x128x16xbf16, #tpu.memory_space<vmem>>, vector<1x128x16xbf16>
    %25 = vector.shape_cast %24 : vector<1x128x16xbf16> to vector<128x16xbf16>
    %26 = vector.shape_cast %23 : vector<128x16xbf16> to vector<1x128x16xbf16>
    tpu.vector_store %arg9[%c0_17, %c0_18, %c0_19], %26 {strides = array<i32>} : memref<1x128x16xbf16, #tpu.memory_space<vmem>>, vector<1x128x16xbf16>,
    return
  }
  func.func @transform_0(%arg0: i32, %arg1: i32) -> (i32, i32, i32) {
    %c0_i32 = arith.constant 0 : i32
    %c0_i32_0 = arith.constant 0 : i32
    return %arg0, %arg1, %c0_i32 : i32, i32, i32
  }
  func.func @transform_1(%arg0: i32, %arg1: i32) -> (i32, i32, i32) {
    %c0_i32 = arith.constant 0 : i32
    %c0_i32_0 = arith.constant 0 : i32
    return %arg0, %arg1, %c0_i32 : i32, i32, i32
  }
  func.func @transform_2(%arg0: i32, %arg1: i32) -> (i32, i32) {
    %c0_i32 = arith.constant 0 : i32
    %c0_i32_0 = arith.constant 0 : i32
    %c0_i32_1 = arith.constant 0 : i32
    return %c0_i32, %c0_i32_0 : i32, i32
  }
  func.func @transform_3(%arg0: i32, %arg1: i32) -> (i32, i32) {
    %c0_i32 = arith.constant 0 : i32
    %c0_i32_0 = arith.constant 0 : i32
    %c0_i32_1 = arith.constant 0 : i32
    return %c0_i32, %c0_i32_0 : i32, i32
  }
  func.func @transform_4(%arg0: i32, %arg1: i32) -> (i32, i32) {
    %c0_i32 = arith.constant 0 : i32
    %c0_i32_0 = arith.constant 0 : i32
    %c0_i32_1 = arith.constant 0 : i32
    return %c0_i32, %c0_i32_0 : i32, i32
  }
  func.func @transform_5(%arg0: i32, %arg1: i32) -> (i32, i32) {
    %c0_i32 = arith.constant 0 : i32
    %c0_i32_0 = arith.constant 0 : i32
    %c0_i32_1 = arith.constant 0 : i32
    return %c0_i32, %c0_i32_0 : i32, i32
  }
  func.func @transform_6(%arg0: i32, %arg1: i32) -> (i32, i32, i32) {
    %c0_i32 = arith.constant 0 : i32
    %c0_i32_0 = arith.constant 0 : i32
    return %arg0, %arg1, %c0_i32 : i32, i32, i32
  }
  func.func @transform_7(%arg0: i32, %arg1: i32) -> (i32, i32, i32) {
    %c0_i32 = arith.constant 0 : i32
    %c0_i32_0 = arith.constant 0 : i32
    return %arg0, %arg1, %c0_i32 : i32, i32, i32
  }
}

</mosaic_0001>

<llo_original>
// kernel: tpu_custom_call.1
$region0: #{tpu_custom_call.1}
  #allocation0 [shape = 'u32[]', space=smem, size = 0x4, offset = 0x4, fixed_abs, tag = 'smem constant byte address 0x4 - core index']
  #allocation1 [shape = 'u32[144,128]{1,0:T(1,128)}', space=vmem, size = 0x12000, scoped, tag = 'internal scratch']
  %s0 = inlined_call_operand.vmem [shape: f32[2,256,16], index: 0, kind: input, shape index: {}]
  %s1 = inlined_call_operand.vmem [shape: f32[2,256,16], index: 1, kind: input, shape index: {}]
  %s2 = inlined_call_operand.vmem [shape: bf16[16,18], index: 2, kind: input, shape index: {}]
  %s3 = inlined_call_operand.vmem [shape: f32[1,18], index: 3, kind: input, shape index: {}]
  %s4 = inlined_call_operand.vmem [shape: bf16[16,2], index: 4, kind: input, shape index: {}]
  %s5 = inlined_call_operand.vmem [shape: f32[1,2], index: 5, kind: input, shape index: {}]
  %s6 = inlined_call_operand.vmem [shape: bf16[2,256,4], index: 6, kind: output, shape index: {0}]
  %s7 = inlined_call_operand.vmem [shape: bf16[2,256,16], index: 7, kind: output, shape index: {1}]
  %8 = xla_tuple %s6, %s7
  %s9 = sld [smem:[#allocation0]]
  $region65: #{tpu_custom_call.1} parent=0
    _
  %s11 = ssub.s32 1, %s9
  %s12 = scalar_select 0, %s11, %s9
  loop: start=0, step=1, limit=6
  $region2: #{tpu_custom_call.1} parent=0 // loop_pre_header
    _
  $region3: #{tpu_custom_call.1} parent=0 // loop_header
    %s14 = sphi 0, %s18
    %p15 = scmp.ge.s32.totalorder %s14, 6
    %s21 = sphi 0, %s33
    %s22 = sphi 0, %s29
    %s23 = sphi 0, %s21
    %s24 = sphi 0, %s22
    %s25 = sphi 0, %s23
    %s26 = sphi 0, %s24
    %s38 = sphi 0, %s40
    %s41 = sphi 0, %s38
    %s42 = sphi 0, %s41
    %s58 = sphi 0, %s42
    %s66 = sphi 0, %s68
    %s69 = sphi 0, %s66
    %s70 = sphi 0, %s69
    %s86 = sphi 0, %s70
    %s90 = sphi 0, %s90
    %s92 = sphi 0, %s90
    %s93 = sphi 0, %s92
    %s107 = sphi 0, %s93
    %s111 = sphi 0, %s111
    %s113 = sphi 0, %s111
    %s114 = sphi 0, %s113
    %s128 = sphi 0, %s114
    %s132 = sphi 0, %s132
    %s134 = sphi 0, %s132
    %s135 = sphi 0, %s134
    %s149 = sphi 0, %s135
    %s153 = sphi 0, %s153
    %s155 = sphi 0, %s153
    %s156 = sphi 0, %s155
    %s170 = sphi 0, %s156
    %s178 = sphi 0, %s180
    %s181 = sphi 0, %s178
    %s182 = sphi 0, %s181
    %s198 = sphi 0, %s182
    %s206 = sphi 0, %s208
    %s209 = sphi 0, %s206
    %s210 = sphi 0, %s209
    %s226 = sphi 0, %s210
  $region4: #{tpu_custom_call.1} parent=0 // loop_header_branch
    %17 = sbr.rel (%p15) target = $region8
  $region5: #{tpu_custom_call.1} parent=0 // loop_body
    %s19 = ssub.s32 %s14, 1
    %s20 = ssub.s32 %s14, 2
    %s27 = sadd.s32 1, %s22
    %p28 = scmp.ge.s32.totalorder %s27, 2
    %s29 = scalar_select %p28, 0, %s27
    %s30 = sadd.s32 1, %s21
    %s31 = scalar_select %p28, %s30, %s21
    %p32 = scmp.ge.s32.totalorder %s31, 2
    %s33 = scalar_select %p32, 0, %s31
    %s34 = ssub.s32 %s21, %s33
    %s35 = ssub.s32 %s22, %s29
    %s36 = sor.u32 %s34, %s35
    %p37 = scmp.eq.s32.totalorder %s36, 0
    %s39 = sadd.s32 %s38, 1
    %s40 = scalar_select %p37, %s38, %s39
    %p43 = pneg %p37
    %p44 = scmp.eq.s32.totalorder %s14, 3
    %p45 = por %p43, %p44
    %p46 = scmp.ne.s32.totalorder %s38, %s41
    %p47 = scmp.eq.s32.totalorder %s14, 0
    %p48 = por %p46, %p47
    %p49 = scmp.ne.s32.totalorder %s38, %s41
    %p50 = scmp.eq.s32.totalorder %s19, 3
    %p51 = por %p49, %p50
    %p52 = scmp.ne.s32.totalorder %s41, %s42
    %p53 = scmp.eq.s32.totalorder %s19, 0
    %p54 = por %p52, %p53
    %p55 = scmp.ne.s32.totalorder %s41, %s42
    %p56 = scmp.eq.s32.totalorder %s20, 3
    %p57 = por %p55, %p56
    %p59 = scmp.ne.s32.totalorder %s42, %s58
    %p60 = scmp.eq.s32.totalorder %s20, 0
    %p61 = por %p59, %p60
    %s62 = ssub.s32 %s21, %s33
    %s63 = ssub.s32 %s22, %s29
    %s64 = sor.u32 %s62, %s63
    %p65 = scmp.eq.s32.totalorder %s64, 0
    %s67 = sadd.s32 %s66, 1
    %s68 = scalar_select %p65, %s66, %s67
    %p71 = pneg %p65
    %p72 = scmp.eq.s32.totalorder %s14, 3
    %p73 = por %p71, %p72
    %p74 = scmp.ne.s32.totalorder %s66, %s69
    %p75 = scmp.eq.s32.totalorder %s14, 0
    %p76 = por %p74, %p75
    %p77 = scmp.ne.s32.totalorder %s66, %s69
    %p78 = scmp.eq.s32.totalorder %s19, 3
    %p79 = por %p77, %p78
    %p80 = scmp.ne.s32.totalorder %s69, %s70
    %p81 = scmp.eq.s32.totalorder %s19, 0
    %p82 = por %p80, %p81
    %p83 = scmp.ne.s32.totalorder %s69, %s70
    %p84 = scmp.eq.s32.totalorder %s20, 3
    %p85 = por %p83, %p84
    %p87 = scmp.ne.s32.totalorder %s70, %s86
    %p88 = scmp.eq.s32.totalorder %s20, 0
    %p89 = por %p87, %p88
    %s91 = sadd.s32 %s90, 1
    %p94 = scmp.eq.s32.totalorder %s14, 3
    %p95 = scmp.ne.s32.totalorder %s90, %s92
    %p96 = scmp.eq.s32.totalorder %s14, 0
    %p97 = por %p95, %p96
    %p98 = scmp.ne.s32.totalorder %s90, %s92
    %p99 = scmp.eq.s32.totalorder %s19, 3
    %p100 = por %p98, %p99
    %p101 = scmp.ne.s32.totalorder %s92, %s93
    %p102 = scmp.eq.s32.totalorder %s19, 0
    %p103 = por %p101, %p102
    %p104 = scmp.ne.s32.totalorder %s92, %s93
    %p105 = scmp.eq.s32.totalorder %s20, 3
    %p106 = por %p104, %p105
    %p108 = scmp.ne.s32.totalorder %s93, %s107
    %p109 = scmp.eq.s32.totalorder %s20, 0
    %p110 = por %p108, %p109
    %s112 = sadd.s32 %s111, 1
    %p115 = scmp.eq.s32.totalorder %s14, 3
    %p116 = scmp.ne.s32.totalorder %s111, %s113
    %p117 = scmp.eq.s32.totalorder %s14, 0
    %p118 = por %p116, %p117
    %p119 = scmp.ne.s32.totalorder %s111, %s113
    %p120 = scmp.eq.s32.totalorder %s19, 3
    %p121 = por %p119, %p120
    %p122 = scmp.ne.s32.totalorder %s113, %s114
    %p123 = scmp.eq.s32.totalorder %s19, 0
    %p124 = por %p122, %p123
    %p125 = scmp.ne.s32.totalorder %s113, %s114
    %p126 = scmp.eq.s32.totalorder %s20, 3
    %p127 = por %p125, %p126
    %p129 = scmp.ne.s32.totalorder %s114, %s128
    %p130 = scmp.eq.s32.totalorder %s20, 0
    %p131 = por %p129, %p130
    %s133 = sadd.s32 %s132, 1
    %p136 = scmp.eq.s32.totalorder %s14, 3
    %p137 = scmp.ne.s32.totalorder %s132, %s134
    %p138 = scmp.eq.s32.totalorder %s14, 0
    %p139 = por %p137, %p138
    %p140 = scmp.ne.s32.totalorder %s132, %s134
    %p141 = scmp.eq.s32.totalorder %s19, 3
    %p142 = por %p140, %p141
    %p143 = scmp.ne.s32.totalorder %s134, %s135
    %p144 = scmp.eq.s32.totalorder %s19, 0
    %p145 = por %p143, %p144
    %p146 = scmp.ne.s32.totalorder %s134, %s135
    %p147 = scmp.eq.s32.totalorder %s20, 3
    %p148 = por %p146, %p147
    %p150 = scmp.ne.s32.totalorder %s135, %s149
    %p151 = scmp.eq.s32.totalorder %s20, 0
    %p152 = por %p150, %p151
    %s154 = sadd.s32 %s153, 1
    %p157 = scmp.eq.s32.totalorder %s14, 3
    %p158 = scmp.ne.s32.totalorder %s153, %s155
    %p159 = scmp.eq.s32.totalorder %s14, 0
    %p160 = por %p158, %p159
    %p161 = scmp.ne.s32.totalorder %s153, %s155
    %p162 = scmp.eq.s32.totalorder %s19, 3
    %p163 = por %p161, %p162
    %p164 = scmp.ne.s32.totalorder %s155, %s156
    %p165 = scmp.eq.s32.totalorder %s19, 0
    %p166 = por %p164, %p165
    %p167 = scmp.ne.s32.totalorder %s155, %s156
    %p168 = scmp.eq.s32.totalorder %s20, 3
    %p169 = por %p167, %p168
    %p171 = scmp.ne.s32.totalorder %s156, %s170
    %p172 = scmp.eq.s32.totalorder %s20, 0
    %p173 = por %p171, %p172
    %s174 = ssub.s32 %s21, %s33
    %s175 = ssub.s32 %s22, %s29
    %s176 = sor.u32 %s174, %s175
    %p177 = scmp.eq.s32.totalorder %s176, 0
    %s179 = sadd.s32 %s178, 1
    %s180 = scalar_select %p177, %s178, %s179
    %p183 = pneg %p177
    %p184 = scmp.eq.s32.totalorder %s14, 3
    %p185 = por %p183, %p184
    %p186 = scmp.ne.s32.totalorder %s178, %s181
    %p187 = scmp.eq.s32.totalorder %s14, 0
    %p188 = por %p186, %p187
    %p189 = scmp.ne.s32.totalorder %s178, %s181
    %p190 = scmp.eq.s32.totalorder %s19, 3
    %p191 = por %p189, %p190
    %p192 = scmp.ne.s32.totalorder %s181, %s182
    %p193 = scmp.eq.s32.totalorder %s19, 0
    %p194 = por %p192, %p193
    %p195 = scmp.ne.s32.totalorder %s181, %s182
    %p196 = scmp.eq.s32.totalorder %s20, 3
    %p197 = por %p195, %p196
    %p199 = scmp.ne.s32.totalorder %s182, %s198
    %p200 = scmp.eq.s32.totalorder %s20, 0
    %p201 = por %p199, %p200
    %s202 = ssub.s32 %s21, %s33
    %s203 = ssub.s32 %s22, %s29
    %s204 = sor.u32 %s202, %s203
    %p205 = scmp.eq.s32.totalorder %s204, 0
    %s207 = sadd.s32 %s206, 1
    %s208 = scalar_select %p205, %s206, %s207
    %p211 = pneg %p205
    %p212 = scmp.eq.s32.totalorder %s14, 3
    %p213 = por %p211, %p212
    %p214 = scmp.ne.s32.totalorder %s206, %s209
    %p215 = scmp.eq.s32.totalorder %s14, 0
    %p216 = por %p214, %p215
    %p217 = scmp.ne.s32.totalorder %s206, %s209
    %p218 = scmp.eq.s32.totalorder %s19, 3
    %p219 = por %p217, %p218
    %p220 = scmp.ne.s32.totalorder %s209, %s210
    %p221 = scmp.eq.s32.totalorder %s19, 0
    %p222 = por %p220, %p221
    %p223 = scmp.ne.s32.totalorder %s209, %s210
    %p224 = scmp.eq.s32.totalorder %s20, 3
    %p225 = por %p223, %p224
    %p227 = scmp.ne.s32.totalorder %s210, %s226
    %p228 = scmp.eq.s32.totalorder %s20, 0
    %p229 = por %p227, %p228
    %p230 = scmp.le.s32.totalorder 1, %s14
    %p231 = scmp.lt.s32.totalorder %s14, 5
    %p232 = pnand %p230, %p231
    %p233 = pneg %p232
    // Predicated region
    $region9: #{tpu_custom_call.1} parent=5 // pred_check
      _
    $region10: #{tpu_custom_call.1} parent=5 // pred_check_branch
      %235 = sbr.rel (%p232) target = $region12
    $region11: #{tpu_custom_call.1} parent=5 // pred_region
      %s236 = ssub.s32 %s14, 1
      // Predicated region
      $region13: #{tpu_custom_call.1} parent=11 // pred_check
        %p237 = pneg %p103
      $region14: #{tpu_custom_call.1} parent=11 // pred_check_branch
        %239 = sbr.rel (%p237) target = $region16
      $region15: #{tpu_custom_call.1} parent=11 // pred_region
        _
      $region16: #{tpu_custom_call.1} parent=11 // pred_fallthru
        _
      // Predicated region
      $region17: #{tpu_custom_call.1} parent=11 // pred_check
        %p240 = pneg %p124
      $region18: #{tpu_custom_call.1} parent=11 // pred_check_branch
        %242 = sbr.rel (%p240) target = $region20
      $region19: #{tpu_custom_call.1} parent=11 // pred_region
        _
      $region20: #{tpu_custom_call.1} parent=11 // pred_fallthru
        _
      // Predicated region
      $region21: #{tpu_custom_call.1} parent=11 // pred_check
        %p243 = pneg %p145
      $region22: #{tpu_custom_call.1} parent=11 // pred_check_branch
        %245 = sbr.rel (%p243) target = $region24
      $region23: #{tpu_custom_call.1} parent=11 // pred_region
        _
      $region24: #{tpu_custom_call.1} parent=11 // pred_fallthru
        _
      // Predicated region
      $region25: #{tpu_custom_call.1} parent=11 // pred_check
        %p246 = pneg %p166
      $region26: #{tpu_custom_call.1} parent=11 // pred_check_branch
        %248 = sbr.rel (%p246) target = $region28
      $region27: #{tpu_custom_call.1} parent=11 // pred_region
        _
      $region28: #{tpu_custom_call.1} parent=11 // pred_fallthru
        _
    $region12: #{tpu_custom_call.1} parent=5 // pred_fallthru
      _
    %p249 = scmp.lt.s32.totalorder %s14, 4
    // Predicated region
    $region29: #{tpu_custom_call.1} parent=5 // pred_check
      %p250 = pneg %p249
    $region30: #{tpu_custom_call.1} parent=5 // pred_check_branch
      %252 = sbr.rel (%p250) target = $region32
    $region31: #{tpu_custom_call.1} parent=5 // pred_region
      // Predicated region
      $region33: #{tpu_custom_call.1} parent=31 // pred_check
        %p253 = pneg %p48
      $region34: #{tpu_custom_call.1} parent=31 // pred_check_branch
        %255 = sbr.rel (%p253) target = $region36
      $region35: #{tpu_custom_call.1} parent=31 // pred_region
        %s256 = smul.u32 16, %s22
        %p257 = scmp.lt.s32.totalorder %s21, 1
        %s258 = scalar_select %p257, %s21, 1
        %p259 = scmp.lt.s32.totalorder %s256, 31
        %s260 = scalar_select %p259, %s256, 31
        %s261 = smul.addr %s258, 32
        %s262 = sadd.s32 %s260, %s261
        %s263 = smul.addr %s262, 8
        %s264 = scalar_lea.vmem %s0, %s263
        %s265 = smul.u32 16, %s22
      $region36: #{tpu_custom_call.1} parent=31 // pred_fallthru
        _
      // Predicated region
      $region37: #{tpu_custom_call.1} parent=31 // pred_check
        %p266 = pneg %p76
      $region38: #{tpu_custom_call.1} parent=31 // pred_check_branch
        %268 = sbr.rel (%p266) target = $region40
      $region39: #{tpu_custom_call.1} parent=31 // pred_region
        %s269 = smul.u32 16, %s22
        %p270 = scmp.lt.s32.totalorder %s21, 1
        %s271 = scalar_select %p270, %s21, 1
        %p272 = scmp.lt.s32.totalorder %s269, 31
        %s273 = scalar_select %p272, %s269, 31
        %s274 = smul.addr %s271, 32
        %s275 = sadd.s32 %s273, %s274
        %s276 = smul.addr %s275, 8
        %s277 = scalar_lea.vmem %s1, %s276
        %s278 = smul.u32 16, %s22
      $region40: #{tpu_custom_call.1} parent=31 // pred_fallthru
        _
    $region32: #{tpu_custom_call.1} parent=5 // pred_fallthru
      _
    %p279 = scmp.le.s32.totalorder 1, %s14
    %p280 = scmp.lt.s32.totalorder %s14, 5
    %p281 = pnand %p279, %p280
    %p282 = pneg %p281
    // Predicated region
    $region41: #{tpu_custom_call.1} parent=5 // pred_check
      _
    $region42: #{tpu_custom_call.1} parent=5 // pred_check_branch
      %284 = sbr.rel (%p281) target = $region44
    $region43: #{tpu_custom_call.1} parent=5 // pred_region
      %s285 = ssub.s32 %s14, 1
      %s286 = smul.u32 16, %s24
      %p287 = scmp.lt.s32.totalorder %s23, 1
      %s288 = scalar_select %p287, %s23, 1
      %p289 = scmp.lt.s32.totalorder %s286, 31
      %s290 = scalar_select %p289, %s286, 31
      %s291 = smul.addr %s288, 32
      %s292 = sadd.s32 %s290, %s291
      %s293 = smul.addr %s292, 8
      %s294 = scalar_lea.vmem %s0, %s293
      %p295 = pneg %p54
      %p296 = pneg %p51
      %s297 = smul.u32 16, %s24
      %p298 = scmp.lt.s32.totalorder %s23, 1
      %s299 = scalar_select %p298, %s23, 1
      %p300 = scmp.lt.s32.totalorder %s297, 31
      %s301 = scalar_select %p300, %s297, 31
      %s302 = smul.addr %s299, 32
      %s303 = sadd.s32 %s301, %s302
      %s304 = smul.addr %s303, 8
      %s305 = scalar_lea.vmem %s1, %s304
      %p306 = pneg %p82
      %p307 = pneg %p79
      %p308 = pneg %p103
      %p309 = pneg %p100
      %p310 = pneg %p124
      %p311 = pneg %p121
      %p312 = pneg %p145
      %p313 = pneg %p142
      %p314 = pneg %p166
      %p315 = pneg %p163
      %p316 = pneg %p194
      %p317 = pneg %p191
      %s318 = smul.u32 16, %s24
      %p319 = scmp.lt.s32.totalorder %s23, 1
      %s320 = scalar_select %p319, %s23, 1
      %p321 = scmp.lt.s32.totalorder %s318, 31
      %s322 = scalar_select %p321, %s318, 31
      %s323 = smul.addr %s320, 32
      %s324 = sadd.s32 %s322, %s323
      %s325 = smul.addr %s324, 4
      %s326 = scalar_lea.vmem %s6, %s325
      %p327 = pneg %p222
      %p328 = pneg %p219
      %s329 = smul.u32 16, %s24
      %p330 = scmp.lt.s32.totalorder %s23, 1
      %s331 = scalar_select %p330, %s23, 1
      %p332 = scmp.lt.s32.totalorder %s329, 31
      %s333 = scalar_select %p332, %s329, 31
      %s334 = smul.addr %s331, 32
      %s335 = sadd.s32 %s333, %s334
      %s336 = smul.addr %s335, 4
      %s337 = scalar_lea.vmem %s7, %s336
      %s338 = smul.u32 16, %s24
      %p339 = scmp.lt.s32.totalorder %s23, 1
      %s340 = scalar_select %p339, %s23, 1
      %p341 = scmp.lt.s32.totalorder %s338, 31
      %s342 = scalar_select %p341, %s338, 31
      %s343 = smul.addr %s340, 32
      %s344 = sadd.s32 %s342, %s343
      %s345 = smul.addr %s344, 8
      %s346 = scalar_lea.vmem %s0, %s345
      %s347 = smul.u32 16, %s24
      %s348 = smul.u32 16, %s24
      %p349 = scmp.lt.s32.totalorder %s23, 1
      %s350 = scalar_select %p349, %s23, 1
      %p351 = scmp.lt.s32.totalorder %s348, 31
      %s352 = scalar_select %p351, %s348, 31
      %s353 = smul.addr %s350, 32
      %s354 = sadd.s32 %s352, %s353
      %s355 = smul.addr %s354, 8
      %s356 = scalar_lea.vmem %s1, %s355
      %s357 = smul.u32 16, %s24
      %s358 = smul.u32 16, %s24
      %p359 = scmp.lt.s32.totalorder %s23, 1
      %s360 = scalar_select %p359, %s23, 1
      %p361 = scmp.lt.s32.totalorder %s358, 31
      %s362 = scalar_select %p361, %s358, 31
      %s363 = smul.addr %s360, 32
      %s364 = sadd.s32 %s362, %s363
      %s365 = smul.addr %s364, 4
      %s366 = scalar_lea.vmem %s6, %s365
      %s367 = smul.u32 16, %s24
      %s368 = smul.u32 16, %s24
      %p369 = scmp.lt.s32.totalorder %s23, 1
      %s370 = scalar_select %p369, %s23, 1
      %p371 = scmp.lt.s32.totalorder %s368, 31
      %s372 = scalar_select %p371, %s368, 31
      %s373 = smul.addr %s370, 32
      %s374 = sadd.s32 %s372, %s373
      %s375 = smul.addr %s374, 4
      %s376 = scalar_lea.vmem %s7, %s375
      %s377 = smul.u32 16, %s24
      %v379 = vld [vmem:[%s346] sm:$0xff]
      %v380 = vld [vmem:[%s346 + $0x8] sm:$0xff]
      %v381 = vld [vmem:[%s346 + $0x10] sm:$0xff]
      %v382 = vld [vmem:[%s346 + $0x18] sm:$0xff]
      %v383 = vld [vmem:[%s346 + $0x20] sm:$0xff]
      %v384 = vld [vmem:[%s346 + $0x28] sm:$0xff]
      %v385 = vld [vmem:[%s346 + $0x30] sm:$0xff]
      %v386 = vld [vmem:[%s346 + $0x38] sm:$0xff]
      %v387 = vld [vmem:[%s346 + $0x40] sm:$0xff]
      %v388 = vld [vmem:[%s346 + $0x48] sm:$0xff]
      %v389 = vld [vmem:[%s346 + $0x50] sm:$0xff]
      %v390 = vld [vmem:[%s346 + $0x58] sm:$0xff]
      %v391 = vld [vmem:[%s346 + $0x60] sm:$0xff]
      %v392 = vld [vmem:[%s346 + $0x68] sm:$0xff]
      %v393 = vld [vmem:[%s346 + $0x70] sm:$0xff]
      %v394 = vld [vmem:[%s346 + $0x78] sm:$0xff]
      %v395 = vpack.c.bf16 %v380, %v379
      %v396 = vpack.c.bf16 %v382, %v381
      %v397 = vpack.c.bf16 %v384, %v383
      %v398 = vpack.c.bf16 %v386, %v385
      %v399 = vpack.c.bf16 %v388, %v387
      %v400 = vpack.c.bf16 %v390, %v389
      %v401 = vpack.c.bf16 %v392, %v391
      %v402 = vpack.c.bf16 %v394, %v393
      %v403 = vld [vmem:[%s356] sm:$0xff]
      %v404 = vld [vmem:[%s356 + $0x8] sm:$0xff]
      %v405 = vld [vmem:[%s356 + $0x10] sm:$0xff]
      %v406 = vld [vmem:[%s356 + $0x18] sm:$0xff]
      %v407 = vld [vmem:[%s356 + $0x20] sm:$0xff]
      %v408 = vld [vmem:[%s356 + $0x28] sm:$0xff]
      %v409 = vld [vmem:[%s356 + $0x30] sm:$0xff]
      %v410 = vld [vmem:[%s356 + $0x38] sm:$0xff]
      %v411 = vld [vmem:[%s356 + $0x40] sm:$0xff]
      %v412 = vld [vmem:[%s356 + $0x48] sm:$0xff]
      %v413 = vld [vmem:[%s356 + $0x50] sm:$0xff]
      %v414 = vld [vmem:[%s356 + $0x58] sm:$0xff]
      %v415 = vld [vmem:[%s356 + $0x60] sm:$0xff]
      %v416 = vld [vmem:[%s356 + $0x68] sm:$0xff]
      %v417 = vld [vmem:[%s356 + $0x70] sm:$0xff]
      %v418 = vld [vmem:[%s356 + $0x78] sm:$0xff]
      %v419 = vpack.c.bf16 %v404, %v403
      %v420 = vpack.c.bf16 %v406, %v405
      %v421 = vpack.c.bf16 %v408, %v407
      %v422 = vpack.c.bf16 %v410, %v409
      %v423 = vpack.c.bf16 %v412, %v411
      %v424 = vpack.c.bf16 %v414, %v413
      %v425 = vpack.c.bf16 %v416, %v415
      %v426 = vpack.c.bf16 %v418, %v417
      %v427 = vld [vmem:[%s2] sm:$0xf]
      %v428 = vld [vmem:[%s2 + $0x4] sm:$0xf]
      %v429 = vld [vmem:[%s3] sm:$0x1]
      %v431 = vlaneseq
      %v432 = vshrl.u32 %v431, 7
      %v433 = vsub.s32 0, %v432
      %v434 = vrot.slane %v429, %v433
      %v438 = vunpack.c.l.b16 %v427
      %v439 = vunpack.c.l.b16 %v428
      %v440 = vpack.c.b16 %v439, %v438
      %vm442 = vcmask 130048
      %v444 = vsel %vm442, %v395, 0
      %v447 = vsel %vm442, %v396, 0
      %v450 = vsel %vm442, %v397, 0
      %v453 = vsel %vm442, %v398, 0
      %v456 = vsel %vm442, %v399, 0
      %v459 = vsel %vm442, %v400, 0
      %v462 = vsel %vm442, %v401, 0
      %v465 = vsel %vm442, %v402, 0
      %467 = vmatprep.subr.bf16.mxu0 0
      %468 = vmatpush1.bf16.msra.mxu0 %v440
      %469 = vmatprep.subr.bf16.mxu0 0
      %470 = vmatpush1.bf16.msra.mxu0 0
      %471 = vmatprep.subr.bf16.mxu0 0
      %472 = vmatpush1.bf16.msra.mxu0 0
      %473 = vmatprep.subr.bf16.mxu0 0
      %474 = vmatpush1.bf16.msra.mxu0 0
      %475 = vmatprep.subr.bf16.mxu0 0
      %476 = vmatpush1.bf16.msra.mxu0 0
      %477 = vmatprep.subr.bf16.mxu0 0
      %478 = vmatpush1.bf16.msra.mxu0 0
      %479 = vmatprep.subr.bf16.mxu0 0
      %480 = vmatpush1.bf16.msra.mxu0 0
      %481 = vmatprep.subr.bf16.mxu0 0
      %482 = vmatpush1.bf16.msra.mxu0 0
      %483 = vmatprep.subr.bf16.mxu0 0
      %484 = vmatpush1.bf16.msra.mxu0 0
      %485 = vmatprep.subr.bf16.mxu0 0
      %486 = vmatpush1.bf16.msra.mxu0 0
      %487 = vmatprep.subr.bf16.mxu0 0
      %488 = vmatpush1.bf16.msra.mxu0 0
      %489 = vmatprep.subr.bf16.mxu0 0
      %490 = vmatpush1.bf16.msra.mxu0 0
      %491 = vmatprep.subr.bf16.mxu0 0
      %492 = vmatpush1.bf16.msra.mxu0 0
      %493 = vmatprep.subr.bf16.mxu0 0
      %494 = vmatpush1.bf16.msra.mxu0 0
      %495 = vmatprep.subr.bf16.mxu0 0
      %496 = vmatpush1.bf16.msra.mxu0 0
      %497 = vmatprep.subr.bf16.mxu0 0
      %498 = vmatpush1.bf16.msra.mxu0 0
      %499 = vmatprep.mubr.bf16.mxu0 0
      %500 = vmatmul.mubr.bf16.gmra.mrb[0].mxu0 %v444
      %v501 = vpop.f32.mrb[0].mxu0
      %v502 = vadd.f32 %v434, %v501
      %v503 = vpop.f32.mrb[0].mxu0
      %v504 = vpop.f32.mrb[0].mxu0
      %v505 = vadd.f32 %v434, %v504
      %v506 = vpop.f32.mrb[0].mxu0
      %507 = vmatprep.mubr.bf16.mxu0 0
      %508 = vmatmul.mubr.bf16.gmra.mrb[0].mxu0 %v447
      %v509 = vpop.f32.mrb[0].mxu0
      %v510 = vadd.f32 %v434, %v509
      %v511 = vpop.f32.mrb[0].mxu0
      %v512 = vpop.f32.mrb[0].mxu0
      %v513 = vadd.f32 %v434, %v512
      %v514 = vpop.f32.mrb[0].mxu0
      %515 = vmatprep.mubr.bf16.mxu0 0
      %516 = vmatmul.mubr.bf16.gmra.mrb[0].mxu0 %v450
      %v517 = vpop.f32.mrb[0].mxu0
      %v518 = vadd.f32 %v434, %v517
      %v519 = vpop.f32.mrb[0].mxu0
      %v520 = vpop.f32.mrb[0].mxu0
      %v521 = vadd.f32 %v434, %v520
      %v522 = vpop.f32.mrb[0].mxu0
      %523 = vmatprep.mubr.bf16.mxu0 0
      %524 = vmatmul.mubr.bf16.gmra.mrb[0].mxu0 %v453
      %v525 = vpop.f32.mrb[0].mxu0
      %v526 = vadd.f32 %v434, %v525
      %v527 = vpop.f32.mrb[0].mxu0
      %v528 = vpop.f32.mrb[0].mxu0
      %v529 = vadd.f32 %v434, %v528
      %v530 = vpop.f32.mrb[0].mxu0
      %531 = vmatprep.mubr.bf16.mxu0 0
      %532 = vmatmul.mubr.bf16.gmra.mrb[0].mxu0 %v456
      %v533 = vpop.f32.mrb[0].mxu0
      %v534 = vadd.f32 %v434, %v533
      %v535 = vpop.f32.mrb[0].mxu0
      %v536 = vpop.f32.mrb[0].mxu0
      %v537 = vadd.f32 %v434, %v536
      %v538 = vpop.f32.mrb[0].mxu0
      %539 = vmatprep.mubr.bf16.mxu0 0
      %540 = vmatmul.mubr.bf16.gmra.mrb[0].mxu0 %v459
      %v541 = vpop.f32.mrb[0].mxu0
      %v542 = vadd.f32 %v434, %v541
      %v543 = vpop.f32.mrb[0].mxu0
      %v544 = vpop.f32.mrb[0].mxu0
      %v545 = vadd.f32 %v434, %v544
      %v546 = vpop.f32.mrb[0].mxu0
      %547 = vmatprep.mubr.bf16.mxu0 0
      %548 = vmatmul.mubr.bf16.gmra.mrb[0].mxu0 %v462
      %v549 = vpop.f32.mrb[0].mxu0
      %v550 = vadd.f32 %v434, %v549
      %v551 = vpop.f32.mrb[0].mxu0
      %v552 = vpop.f32.mrb[0].mxu0
      %v553 = vadd.f32 %v434, %v552
      %v554 = vpop.f32.mrb[0].mxu0
      %555 = vmatprep.mubr.bf16.mxu0 0
      %556 = vmatmul.mubr.bf16.gmra.mrb[0].mxu0 %v465
      %v557 = vpop.f32.mrb[0].mxu0
      %v558 = vadd.f32 %v434, %v557
      %v559 = vpop.f32.mrb[0].mxu0
      %v560 = vpop.f32.mrb[0].mxu0
      %v561 = vadd.f32 %v434, %v560
      %v562 = vpop.f32.mrb[0].mxu0
      %563 = vdwg.mxu0
      %v564 = vld [vmem:[%s4] sm:$0xf]
      %v565 = vld [vmem:[%s4 + $0x4] sm:$0xf]
      %v566 = vld [vmem:[%s5] sm:$0x1]
      %v568 = vlaneseq
      %v569 = vshrl.u32 %v568, 7
      %v570 = vsub.s32 0, %v569
      %v571 = vrot.slane %v566, %v570
      %v575 = vunpack.c.l.b16 %v564
      %v576 = vunpack.c.l.b16 %v565
      %v577 = vpack.c.b16 %v576, %v575
      %v580 = vsel %vm442, %v419, 0
      %v583 = vsel %vm442, %v420, 0
      %v586 = vsel %vm442, %v421, 0
      %v589 = vsel %vm442, %v422, 0
      %v592 = vsel %vm442, %v423, 0
      %v595 = vsel %vm442, %v424, 0
      %v598 = vsel %vm442, %v425, 0
      %v601 = vsel %vm442, %v426, 0
      %603 = vmatprep.subr.bf16.mxu0 0
      %604 = vmatpush1.bf16.msra.mxu0 %v577
      %605 = vmatprep.subr.bf16.mxu0 0
      %606 = vmatpush1.bf16.msra.mxu0 0
      %607 = vmatprep.subr.bf16.mxu0 0
      %608 = vmatpush1.bf16.msra.mxu0 0
      %609 = vmatprep.subr.bf16.mxu0 0
      %610 = vmatpush1.bf16.msra.mxu0 0
      %611 = vmatprep.subr.bf16.mxu0 0
      %612 = vmatpush1.bf16.msra.mxu0 0
      %613 = vmatprep.subr.bf16.mxu0 0
      %614 = vmatpush1.bf16.msra.mxu0 0
      %615 = vmatprep.subr.bf16.mxu0 0
      %616 = vmatpush1.bf16.msra.mxu0 0
      %617 = vmatprep.subr.bf16.mxu0 0
      %618 = vmatpush1.bf16.msra.mxu0 0
      %619 = vmatprep.subr.bf16.mxu0 0
      %620 = vmatpush1.bf16.msra.mxu0 0
      %621 = vmatprep.subr.bf16.mxu0 0
      %622 = vmatpush1.bf16.msra.mxu0 0
      %623 = vmatprep.subr.bf16.mxu0 0
      %624 = vmatpush1.bf16.msra.mxu0 0
      %625 = vmatprep.subr.bf16.mxu0 0
      %626 = vmatpush1.bf16.msra.mxu0 0
      %627 = vmatprep.subr.bf16.mxu0 0
      %628 = vmatpush1.bf16.msra.mxu0 0
      %629 = vmatprep.subr.bf16.mxu0 0
      %630 = vmatpush1.bf16.msra.mxu0 0
      %631 = vmatprep.subr.bf16.mxu0 0
      %632 = vmatpush1.bf16.msra.mxu0 0
      %633 = vmatprep.subr.bf16.mxu0 0
      %634 = vmatpush1.bf16.msra.mxu0 0
      %635 = vmatprep.mubr.bf16.mxu0 0
      %636 = vmatmul.mubr.bf16.gmra.mrb[0].mxu0 %v580
      %v637 = vpop.f32.mrb[0].mxu0
      %v638 = vadd.f32 %v571, %v637
      %v639 = vpop.f32.mrb[0].mxu0
      %v640 = vpop.f32.mrb[0].mxu0
      %v641 = vadd.f32 %v571, %v640
      %v642 = vpop.f32.mrb[0].mxu0
      %643 = vmatprep.mubr.bf16.mxu0 0
      %644 = vmatmul.mubr.bf16.gmra.mrb[0].mxu0 %v583
      %v645 = vpop.f32.mrb[0].mxu0
      %v646 = vadd.f32 %v571, %v645
      %v647 = vpop.f32.mrb[0].mxu0
      %v648 = vpop.f32.mrb[0].mxu0
      %v649 = vadd.f32 %v571, %v648
      %v650 = vpop.f32.mrb[0].mxu0
      %651 = vmatprep.mubr.bf16.mxu0 0
      %652 = vmatmul.mubr.bf16.gmra.mrb[0].mxu0 %v586
      %v653 = vpop.f32.mrb[0].mxu0
      %v654 = vadd.f32 %v571, %v653
      %v655 = vpop.f32.mrb[0].mxu0
      %v656 = vpop.f32.mrb[0].mxu0
      %v657 = vadd.f32 %v571, %v656
      %v658 = vpop.f32.mrb[0].mxu0
      %659 = vmatprep.mubr.bf16.mxu0 0
      %660 = vmatmul.mubr.bf16.gmra.mrb[0].mxu0 %v589
      %v661 = vpop.f32.mrb[0].mxu0
      %v662 = vadd.f32 %v571, %v661
      %v663 = vpop.f32.mrb[0].mxu0
      %v664 = vpop.f32.mrb[0].mxu0
      %v665 = vadd.f32 %v571, %v664
      %v666 = vpop.f32.mrb[0].mxu0
      %667 = vmatprep.mubr.bf16.mxu0 0
      %668 = vmatmul.mubr.bf16.gmra.mrb[0].mxu0 %v592
      %v669 = vpop.f32.mrb[0].mxu0
      %v670 = vadd.f32 %v571, %v669
      %v671 = vpop.f32.mrb[0].mxu0
      %v672 = vpop.f32.mrb[0].mxu0
      %v673 = vadd.f32 %v571, %v672
      %v674 = vpop.f32.mrb[0].mxu0
      %675 = vmatprep.mubr.bf16.mxu0 0
      %676 = vmatmul.mubr.bf16.gmra.mrb[0].mxu0 %v595
      %v677 = vpop.f32.mrb[0].mxu0
      %v678 = vadd.f32 %v571, %v677
      %v679 = vpop.f32.mrb[0].mxu0
      %v680 = vpop.f32.mrb[0].mxu0
      %v681 = vadd.f32 %v571, %v680
      %v682 = vpop.f32.mrb[0].mxu0
      %683 = vmatprep.mubr.bf16.mxu0 0
      %684 = vmatmul.mubr.bf16.gmra.mrb[0].mxu0 %v598
      %v685 = vpop.f32.mrb[0].mxu0
      %v686 = vadd.f32 %v571, %v685
      %v687 = vpop.f32.mrb[0].mxu0
      %v688 = vpop.f32.mrb[0].mxu0
      %v689 = vadd.f32 %v571, %v688
      %v690 = vpop.f32.mrb[0].mxu0
      %691 = vmatprep.mubr.bf16.mxu0 0
      %692 = vmatmul.mubr.bf16.gmra.mrb[0].mxu0 %v601
      %v693 = vpop.f32.mrb[0].mxu0
      %v694 = vadd.f32 %v571, %v693
      %v695 = vpop.f32.mrb[0].mxu0
      %v696 = vpop.f32.mrb[0].mxu0
      %v697 = vadd.f32 %v571, %v696
      %v698 = vpop.f32.mrb[0].mxu0
      %699 = vdwg.mxu0
      %716 = vrot.lane.b32.xlu0 %v638, 2
      %v717 = vpop.permute.xlu0 %716
      %718 = vrot.lane.b32.xlu0 %v641, 2
      %v719 = vpop.permute.xlu0 %718
      %720 = vrot.lane.b32.xlu0 %v646, 2
      %v721 = vpop.permute.xlu0 %720
      %722 = vrot.lane.b32.xlu0 %v649, 2
      %v723 = vpop.permute.xlu0 %722
      %724 = vrot.lane.b32.xlu0 %v654, 2
      %v725 = vpop.permute.xlu0 %724
      %726 = vrot.lane.b32.xlu0 %v657, 2
      %v727 = vpop.permute.xlu0 %726
      %728 = vrot.lane.b32.xlu0 %v662, 2
      %v729 = vpop.permute.xlu0 %728
      %730 = vrot.lane.b32.xlu0 %v665, 2
      %v731 = vpop.permute.xlu0 %730
      %732 = vrot.lane.b32.xlu0 %v670, 2
      %v733 = vpop.permute.xlu0 %732
      %734 = vrot.lane.b32.xlu0 %v673, 2
      %v735 = vpop.permute.xlu0 %734
      %736 = vrot.lane.b32.xlu0 %v678, 2
      %v737 = vpop.permute.xlu0 %736
      %738 = vrot.lane.b32.xlu0 %v681, 2
      %v739 = vpop.permute.xlu0 %738
      %740 = vrot.lane.b32.xlu0 %v686, 2
      %v741 = vpop.permute.xlu0 %740
      %742 = vrot.lane.b32.xlu0 %v689, 2
      %v743 = vpop.permute.xlu0 %742
      %744 = vrot.lane.b32.xlu0 %v694, 2
      %v745 = vpop.permute.xlu0 %744
      %746 = vrot.lane.b32.xlu0 %v697, 2
      %v747 = vpop.permute.xlu0 %746
      %vm764 = vcmask 15360
      %v765 = vsel %vm764, %v502, %v717
      %v766 = vsel %vm764, %v505, %v719
      %v767 = vsel %vm764, %v510, %v721
      %v768 = vsel %vm764, %v513, %v723
      %v769 = vsel %vm764, %v518, %v725
      %v770 = vsel %vm764, %v521, %v727
      %v771 = vsel %vm764, %v526, %v729
      %v772 = vsel %vm764, %v529, %v731
      %v773 = vsel %vm764, %v534, %v733
      %v774 = vsel %vm764, %v537, %v735
      %v775 = vsel %vm764, %v542, %v737
      %v776 = vsel %vm764, %v545, %v739
      %v777 = vsel %vm764, %v550, %v741
      %v778 = vsel %vm764, %v553, %v743
      %v779 = vsel %vm764, %v558, %v745
      %v780 = vsel %vm764, %v561, %v747
      %v781 = vpack.c.bf16 %v766, %v765
      %v782 = vpack.c.bf16 %v768, %v767
      %v783 = vpack.c.bf16 %v770, %v769
      %v784 = vpack.c.bf16 %v772, %v771
      %v785 = vpack.c.bf16 %v774, %v773
      %v786 = vpack.c.bf16 %v776, %v775
      %v787 = vpack.c.bf16 %v778, %v777
      %v788 = vpack.c.bf16 %v780, %v779
      %v797 = vunpack.c.l.b16 %v781
      %v798 = vunpack.c.h.b16 %v781
      %v799 = vunpack.c.l.b16 %v782
      %v800 = vunpack.c.h.b16 %v782
      %v801 = vunpack.c.l.b16 %v783
      %v802 = vunpack.c.h.b16 %v783
      %v803 = vunpack.c.l.b16 %v784
      %v804 = vunpack.c.h.b16 %v784
      %v805 = vunpack.c.l.b16 %v785
      %v806 = vunpack.c.h.b16 %v785
      %v807 = vunpack.c.l.b16 %v786
      %v808 = vunpack.c.h.b16 %v786
      %v809 = vunpack.c.l.b16 %v787
      %v810 = vunpack.c.h.b16 %v787
      %v811 = vunpack.c.l.b16 %v788
      %v812 = vunpack.c.h.b16 %v788
      %v813 = vpack.c.b16 %v797, %v797
      %v814 = vpack.c.b16 %v798, %v798
      %v815 = vpack.c.b16 %v799, %v799
      %v816 = vpack.c.b16 %v800, %v800
      %v817 = vpack.c.b16 %v801, %v801
      %v818 = vpack.c.b16 %v802, %v802
      %v819 = vpack.c.b16 %v803, %v803
      %v820 = vpack.c.b16 %v804, %v804
      %v821 = vpack.c.b16 %v805, %v805
      %v822 = vpack.c.b16 %v806, %v806
      %v823 = vpack.c.b16 %v807, %v807
      %v824 = vpack.c.b16 %v808, %v808
      %v825 = vpack.c.b16 %v809, %v809
      %v826 = vpack.c.b16 %v810, %v810
      %v827 = vpack.c.b16 %v811, %v811
      %v828 = vpack.c.b16 %v812, %v812
      %vm845 = vcmask 27648
      %846 = vst.msk [vmem:[%s366] sm:$0xf] %vm845, %v813
      %847 = vst.msk [vmem:[%s366 + $0x4] sm:$0xf] %vm845, %v814
      %848 = vst.msk [vmem:[%s366 + $0x8] sm:$0xf] %vm845, %v815
      %849 = vst.msk [vmem:[%s366 + $0xc] sm:$0xf] %vm845, %v816
      %850 = vst.msk [vmem:[%s366 + $0x10] sm:$0xf] %vm845, %v817
      %851 = vst.msk [vmem:[%s366 + $0x14] sm:$0xf] %vm845, %v818
      %852 = vst.msk [vmem:[%s366 + $0x18] sm:$0xf] %vm845, %v819
      %853 = vst.msk [vmem:[%s366 + $0x1c] sm:$0xf] %vm845, %v820
      %854 = vst.msk [vmem:[%s366 + $0x20] sm:$0xf] %vm845, %v821
      %855 = vst.msk [vmem:[%s366 + $0x24] sm:$0xf] %vm845, %v822
      %856 = vst.msk [vmem:[%s366 + $0x28] sm:$0xf] %vm845, %v823
      %857 = vst.msk [vmem:[%s366 + $0x2c] sm:$0xf] %vm845, %v824
      %858 = vst.msk [vmem:[%s366 + $0x30] sm:$0xf] %vm845, %v825
      %859 = vst.msk [vmem:[%s366 + $0x34] sm:$0xf] %vm845, %v826
      %860 = vst.msk [vmem:[%s366 + $0x38] sm:$0xf] %vm845, %v827
      %861 = vst.msk [vmem:[%s366 + $0x3c] sm:$0xf] %vm845, %v828
      %v862 = vpack.c.bf16 %v505, %v502
      %v863 = vpack.c.bf16 %v513, %v510
      %v864 = vpack.c.bf16 %v521, %v518
      %v865 = vpack.c.bf16 %v529, %v526
      %v866 = vpack.c.bf16 %v537, %v534
      %v867 = vpack.c.bf16 %v545, %v542
      %v868 = vpack.c.bf16 %v553, %v550
      %v869 = vpack.c.bf16 %v561, %v558
      %v878 = vunpack.c.l.b16 %v862
      %v879 = vunpack.c.h.b16 %v862
      %v880 = vunpack.c.l.b16 %v863
      %v881 = vunpack.c.h.b16 %v863
      %v882 = vunpack.c.l.b16 %v864
      %v883 = vunpack.c.h.b16 %v864
      %v884 = vunpack.c.l.b16 %v865
      %v885 = vunpack.c.h.b16 %v865
      %v886 = vunpack.c.l.b16 %v866
      %v887 = vunpack.c.h.b16 %v866
      %v888 = vunpack.c.l.b16 %v867
      %v889 = vunpack.c.h.b16 %v867
      %v890 = vunpack.c.l.b16 %v868
      %v891 = vunpack.c.h.b16 %v868
      %v892 = vunpack.c.l.b16 %v869
      %v893 = vunpack.c.h.b16 %v869
      %v894 = vpack.c.b16 %v878, %v878
      %v895 = vpack.c.b16 %v879, %v879
      %v896 = vpack.c.b16 %v880, %v880
      %v897 = vpack.c.b16 %v881, %v881
      %v898 = vpack.c.b16 %v882, %v882
      %v899 = vpack.c.b16 %v883, %v883
      %v900 = vpack.c.b16 %v884, %v884
      %v901 = vpack.c.b16 %v885, %v885
      %v902 = vpack.c.b16 %v886, %v886
      %v903 = vpack.c.b16 %v887, %v887
      %v904 = vpack.c.b16 %v888, %v888
      %v905 = vpack.c.b16 %v889, %v889
      %v906 = vpack.c.b16 %v890, %v890
      %v907 = vpack.c.b16 %v891, %v891
      %v908 = vpack.c.b16 %v892, %v892
      %v909 = vpack.c.b16 %v893, %v893
      %910 = vrot.lane.b32.xlu0 %v894, 126
      %v911 = vpop.permute.xlu0 %910
      %912 = vrot.lane.b32.xlu0 %v895, 126
      %v913 = vpop.permute.xlu0 %912
      %914 = vrot.lane.b32.xlu0 %v896, 126
      %v915 = vpop.permute.xlu0 %914
      %916 = vrot.lane.b32.xlu0 %v897, 126
      %v917 = vpop.permute.xlu0 %916
      %918 = vrot.lane.b32.xlu0 %v898, 126
      %v919 = vpop.permute.xlu0 %918
      %920 = vrot.lane.b32.xlu0 %v899, 126
      %v921 = vpop.permute.xlu0 %920
      %922 = vrot.lane.b32.xlu0 %v900, 126
      %v923 = vpop.permute.xlu0 %922
      %924 = vrot.lane.b32.xlu0 %v901, 126
      %v925 = vpop.permute.xlu0 %924
      %926 = vrot.lane.b32.xlu0 %v902, 126
      %v927 = vpop.permute.xlu0 %926
      %928 = vrot.lane.b32.xlu0 %v903, 126
      %v929 = vpop.permute.xlu0 %928
      %930 = vrot.lane.b32.xlu0 %v904, 126
      %v931 = vpop.permute.xlu0 %930
      %932 = vrot.lane.b32.xlu0 %v905, 126
      %v933 = vpop.permute.xlu0 %932
      %934 = vrot.lane.b32.xlu0 %v906, 126
      %v935 = vpop.permute.xlu0 %934
      %936 = vrot.lane.b32.xlu0 %v907, 126
      %v937 = vpop.permute.xlu0 %936
      %938 = vrot.lane.b32.xlu0 %v908, 126
      %v939 = vpop.permute.xlu0 %938
      %940 = vrot.lane.b32.xlu0 %v909, 126
      %v941 = vpop.permute.xlu0 %940
      %vm958 = vcmask 125952
      %959 = vst.msk [vmem:[%s376] sm:$0xf] %vm958, %v911
      %960 = vst.msk [vmem:[%s376 + $0x4] sm:$0xf] %vm958, %v913
      %961 = vst.msk [vmem:[%s376 + $0x8] sm:$0xf] %vm958, %v915
      %962 = vst.msk [vmem:[%s376 + $0xc] sm:$0xf] %vm958, %v917
      %963 = vst.msk [vmem:[%s376 + $0x10] sm:$0xf] %vm958, %v919
      %964 = vst.msk [vmem:[%s376 + $0x14] sm:$0xf] %vm958, %v921
      %965 = vst.msk [vmem:[%s376 + $0x18] sm:$0xf] %vm958, %v923
      %966 = vst.msk [vmem:[%s376 + $0x1c] sm:$0xf] %vm958, %v925
      %967 = vst.msk [vmem:[%s376 + $0x20] sm:$0xf] %vm958, %v927
      %968 = vst.msk [vmem:[%s376 + $0x24] sm:$0xf] %vm958, %v929
      %969 = vst.msk [vmem:[%s376 + $0x28] sm:$0xf] %vm958, %v931
      %970 = vst.msk [vmem:[%s376 + $0x2c] sm:$0xf] %vm958, %v933
      %971 = vst.msk [vmem:[%s376 + $0x30] sm:$0xf] %vm958, %v935
      %972 = vst.msk [vmem:[%s376 + $0x34] sm:$0xf] %vm958, %v937
      %973 = vst.msk [vmem:[%s376 + $0x38] sm:$0xf] %vm958, %v939
      %974 = vst.msk [vmem:[%s376 + $0x3c] sm:$0xf] %vm958, %v941
      %s975 = smul.u32 16, %s24
      %p976 = scmp.lt.s32.totalorder %s23, 1
      %s977 = scalar_select %p976, %s23, 1
      %p978 = scmp.lt.s32.totalorder %s975, 31
      %s979 = scalar_select %p978, %s975, 31
      %s980 = smul.addr %s977, 32
      %s981 = sadd.s32 %s979, %s980
      %s982 = smul.addr %s981, 4
      %s983 = scalar_lea.vmem %s6, %s982
      %s984 = smul.u32 16, %s24
      %p985 = scmp.lt.s32.totalorder %s23, 1
      %s986 = scalar_select %p985, %s23, 1
      %p987 = scmp.lt.s32.totalorder %s984, 31
      %s988 = scalar_select %p987, %s984, 31
      %s989 = smul.addr %s986, 32
      %s990 = sadd.s32 %s988, %s989
      %s991 = smul.addr %s990, 4
      %s992 = scalar_lea.vmem %s7, %s991
      // Predicated region
      $region45: #{tpu_custom_call.1} parent=43 // pred_check
        %p993 = pneg %p191
      $region46: #{tpu_custom_call.1} parent=43 // pred_check_branch
        %995 = sbr.rel (%p993) target = $region48
      $region47: #{tpu_custom_call.1} parent=43 // pred_region
        %s996 = smul.u32 16, %s24
      $region48: #{tpu_custom_call.1} parent=43 // pred_fallthru
        _
      // Predicated region
      $region49: #{tpu_custom_call.1} parent=43 // pred_check
        %p997 = pneg %p219
      $region50: #{tpu_custom_call.1} parent=43 // pred_check_branch
        %999 = sbr.rel (%p997) target = $region52
      $region51: #{tpu_custom_call.1} parent=43 // pred_region
        %s1000 = smul.u32 16, %s24
      $region52: #{tpu_custom_call.1} parent=43 // pred_fallthru
        _
    $region44: #{tpu_custom_call.1} parent=5 // pred_fallthru
      _
    %p1001 = scmp.le.s32.totalorder 2, %s14
    // Predicated region
    $region53: #{tpu_custom_call.1} parent=5 // pred_check
      %p1002 = pneg %p1001
    $region54: #{tpu_custom_call.1} parent=5 // pred_check_branch
      %1004 = sbr.rel (%p1002) target = $region56
    $region55: #{tpu_custom_call.1} parent=5 // pred_region
      %s1005 = ssub.s32 %s14, 2
      // Predicated region
      $region57: #{tpu_custom_call.1} parent=55 // pred_check
        %p1006 = pneg %p197
      $region58: #{tpu_custom_call.1} parent=55 // pred_check_branch
        %1008 = sbr.rel (%p1006) target = $region60
      $region59: #{tpu_custom_call.1} parent=55 // pred_region
        %s1009 = smul.u32 16, %s26
        %p1010 = scmp.lt.s32.totalorder %s25, 1
        %s1011 = scalar_select %p1010, %s25, 1
        %p1012 = scmp.lt.s32.totalorder %s1009, 31
        %s1013 = scalar_select %p1012, %s1009, 31
        %s1014 = smul.addr %s1011, 32
        %s1015 = sadd.s32 %s1013, %s1014
        %s1016 = smul.addr %s1015, 4
        %s1017 = scalar_lea.vmem %s6, %s1016
      $region60: #{tpu_custom_call.1} parent=55 // pred_fallthru
        _
      // Predicated region
      $region61: #{tpu_custom_call.1} parent=55 // pred_check
        %p1018 = pneg %p225
      $region62: #{tpu_custom_call.1} parent=55 // pred_check_branch
        %1020 = sbr.rel (%p1018) target = $region64
      $region63: #{tpu_custom_call.1} parent=55 // pred_region
        %s1021 = smul.u32 16, %s26
        %p1022 = scmp.lt.s32.totalorder %s25, 1
        %s1023 = scalar_select %p1022, %s25, 1
        %p1024 = scmp.lt.s32.totalorder %s1021, 31
        %s1025 = scalar_select %p1024, %s1021, 31
        %s1026 = smul.addr %s1023, 32
        %s1027 = sadd.s32 %s1025, %s1026
        %s1028 = smul.addr %s1027, 4
        %s1029 = scalar_lea.vmem %s7, %s1028
      $region64: #{tpu_custom_call.1} parent=55 // pred_fallthru
        _
    $region56: #{tpu_custom_call.1} parent=5 // pred_fallthru
      _
  $region6: #{tpu_custom_call.1} parent=0 // loop_footer
    %s18 = sadd.s32 1, %s14
  $region7: #{tpu_custom_call.1} parent=0 // loop_footer_branch
    %13 = sbr.rel target = $region3
  $region8: #{tpu_custom_call.1} parent=0 // loop_exit
    _

</llo_original>
